<compile_context>
chip_gen: v5e
topology: v5e:2x2
jax: 0.10.0
libtpu: 0.0.40
codegen_flags: <defaults>
</compile_context>

<pallas_src>
import functools

import jax
import jax.numpy as jnp
from jax.experimental import pallas as pl
from jax.experimental.pallas import tpu as pltpu


def _round_up(x, m):
    return (x + m - 1) // m * m


def _vmem_capacity_bytes():
    """Generation-aware VMEM capacity (128 MiB v5e/v6e, 64 MiB v7x)."""
    try:
        return int(pltpu.get_tpu_info().vmem_capacity_bytes)
    except Exception:
        return 64 << 20  # conservative fallback (v7x-sized)


def _is_multi_core_chip():
    """True on chips whose TensorCores share the 'parallel' grid axis (v7x)."""
    try:
        return "v7" in jax.devices()[0].device_kind.lower()
    except Exception:
        return False


def _generator_kernel(x_ref, w_ref, b_ref, o_ref, m_ref, l_ref):
    # x_ref: (TM, D)   w_ref: (D, TV)   b_ref: (1, TV)   o_ref: (TM, V_pad)
    # m_ref / l_ref: (TM, 1) f32 running max / running sum-exp (online LSE).
    j = pl.program_id(1)
    num_v = pl.num_programs(1)
    tv = w_ref.shape[1]

    @pl.when(j == 0)
    def _():
        m_ref[...] = jnp.full_like(m_ref, -jnp.inf)
        l_ref[...] = jnp.zeros_like(l_ref)

    # Linear for this vocab tile (f32 accumulation on the MXU).
    logits = jnp.dot(x_ref[...], w_ref[...], preferred_element_type=jnp.float32)
    logits = logits + b_ref[...].astype(jnp.float32)

    # Stash the raw logits into the resident output block (the output block
    # index is constant along the vocab grid axis -> accumulator pattern).
    v_start = pl.multiple_of(j * tv, 128)
    o_ref[:, pl.ds(v_start, tv)] = logits.astype(o_ref.dtype)

    # Online max / sum-exp update; runs in the MXU shadow (XLU max, EUP exp).
    m_prev = m_ref[...]
    m_new = jnp.maximum(m_prev, jnp.max(logits, axis=-1, keepdims=True))
    l_ref[...] = (l_ref[...] * jnp.exp(m_prev - m_new)
                  + jnp.sum(jnp.exp(logits - m_new), axis=-1, keepdims=True))
    m_ref[...] = m_new

    # Last vocab step: one cheap VPU subtract pass turns logits into log-probs,
    # chunked over tv-wide slices to avoid a (TM, V_pad) f32 temporary.
    @pl.when(j == num_v - 1)
    def _():
        lse = m_ref[...] + jnp.log(l_ref[...])

        def body(c, carry):
            start = pl.multiple_of(c * tv, 128)
            blk = o_ref[:, pl.ds(start, tv)].astype(jnp.float32)
            o_ref[:, pl.ds(start, tv)] = (blk - lse).astype(o_ref.dtype)
            return carry

        jax.lax.fori_loop(0, num_v, body, 0)


def prepare_generator_params(weight, bias, dtype=None):
    """One-time parameter prep (do NOT call per forward).

    weight: (vocab, d_model) -- nn.Linear.weight convention
    bias:   (vocab,)
    Returns (w_t, b2d): weight pre-transposed to (d_model, vocab) in `dtype`
    (bf16 recommended on v6e/v7x: halves HBM traffic, MXU-native), bias as
    (1, vocab) f32 (added in f32 inside the kernel regardless of dtype).
    """
    if dtype is None:
        dtype = weight.dtype
    w_t = jnp.asarray(weight, dtype=dtype).T          # (d_model, vocab)
    b2d = jnp.asarray(bias, dtype=jnp.float32).reshape(1, -1)
    return w_t, b2d


@functools.partial(jax.jit, static_argnames=("tile_m", "tile_v", "out_dtype"))
def generator_forward(x, w_t, b2d, *, tile_m=None, tile_v=1024,
                      out_dtype=jnp.float32):
    """
    x:    (batch, seq, d_model)
    w_t:  (d_model, vocab)  pre-transposed weight (see prepare_generator_params)
    b2d:  (1, vocab)        bias
    returns (batch, seq, vocab) log-probabilities in `out_dtype`.

    out_dtype=jnp.bfloat16 halves HBM writeback (useful on v7x); the LSE is
    always computed from f32 logits, so bf16 output only rounds the final
    stored log-probs (~1e-2 absolute).
    """
    batch, seq, d_model = x.shape
    d2, vocab = w_t.shape
    assert d2 == d_model

    x2d = x.reshape(batch * seq, d_model)
    if x2d.dtype != w_t.dtype:
        x2d = x2d.astype(w_t.dtype)

    M = batch * seq
    p_item = jnp.dtype(w_t.dtype).itemsize
    o_item = jnp.dtype(out_dtype).itemsize

    vmem_cap = _vmem_capacity_bytes()
    budget = (vmem_cap * 3) // 4          # headroom for compiler scratch

    # --- vocab tile: lane aligned, multiple of 256 (full MXU width on v6e/v7x),
    #     capped so the double-buffered (D, tv) weight stream stays <= VMEM/4.
    tv = min(int(tile_v), _round_up(vocab, 256))
    tv = max(256, _round_up(tv, 256))
    while tv > 256 and 2 * d_model * tv * p_item > vmem_cap // 4:
        tv -= 256
    v_pad = _round_up(vocab, tv)

    # --- M tile: sublane multiple of the streamed dtype; sized from the VMEM
    #     budget (bigger tm => fewer re-streams of the (D, V) weight, the
    #     dominant HBM lever on v5e/v6e).  Tiles shrink to fit; the VMEM limit
    #     is never silently over-promised.
    sub = {4: 8, 2: 16, 1: 32}.get(p_item, 8)
    fixed = 2 * d_model * tv * p_item + 2 * tv * 4              # W + bias streams
    per_row = 2 * d_model * p_item + 2 * v_pad * o_item + 16    # x + out + m/l
    tm_cap = max(sub, ((budget - fixed) // per_row) // sub * sub)
    tm_hi = int(tile_m) if tile_m is not None else 1024
    tm = min(tm_hi, tm_cap, _round_up(M, sub))
    if _is_multi_core_chip() and M >= 2 * sub:
        # keep >= 2 blocks on the "parallel" axis so both v7x cores get work
        tm = min(tm, _round_up(pl.cdiv(M, 2), sub))
    tm = max(sub, tm // sub * sub)
    m_pad = _round_up(M, tm)

    if m_pad != M:
        x2d = jnp.pad(x2d, ((0, m_pad - M), (0, 0)))
    if v_pad != vocab:
        w_t = jnp.pad(w_t, ((0, 0), (0, v_pad - vocab)))
        # Very negative (finite) bias so padded columns vanish from the LSE.
        # NOTE: -1e30 assumes f32/bf16 bias; it would overflow fp16.
        b2d = jnp.pad(b2d, ((0, 0), (0, v_pad - vocab)), constant_values=-1e30)

    grid = (m_pad // tm, v_pad // tv)

    vmem_est = fixed + tm * per_row + (4 << 20)
    vmem_bytes = int(min(vmem_cap, max(vmem_est, 32 << 20)))

    cost = pl.CostEstimate(
        flops=2 * M * vocab * d_model,
        transcendentals=M * vocab,
        bytes_accessed=(M * d_model * p_item + d_model * vocab * p_item
                        + vocab * 4 + M * vocab * o_item),
    )

    out = pl.pallas_call(
        _generator_kernel,
        out_shape=jax.ShapeDtypeStruct((m_pad, v_pad), out_dtype),
        grid_spec=pltpu.PrefetchScalarGridSpec(
            num_scalar_prefetch=0,
            grid=grid,
            in_specs=[
                # x tile: constant along the vocab axis -> fetched once per i.
                pl.BlockSpec((tm, d_model), lambda i, j: (i, 0)),
                # weight: streamed over vocab tiles (double-buffered by Pallas).
                pl.BlockSpec((d_model, tv), lambda i, j: (0, j)),
                # bias: streamed with the weight.
                pl.BlockSpec((1, tv), lambda i, j: (0, j)),
            ],
            # Output block resident across the vocab axis (same index for all j).
            out_specs=pl.BlockSpec((tm, v_pad), lambda i, j: (i, 0)),
            scratch_shapes=[pltpu.VMEM((tm, 1), jnp.float32),   # running max
                            pltpu.VMEM((tm, 1), jnp.float32)],  # running sum-exp
        ),
        compiler_params=pltpu.CompilerParams(
            dimension_semantics=("parallel", "arbitrary"),
            vmem_limit_bytes=vmem_bytes,
        ),
        cost_estimate=cost,
    )(x2d, w_t, b2d)

    out = out[:M, :vocab]
    return out.reshape(batch, seq, vocab)


if __name__ == "__main__":
    # Small shapes consistent with Generator.forward: x is (batch, seq, d_model),
    # output (batch, seq, vocab).  Chosen so the kernel exercises M padding
    # (18 -> 32 rows, two M tiles), vocab tiling (600 -> 3 x 256-wide tiles) and
    # vocab padding (600 -> 768 columns masked with a very negative bias).
    batch, seq, d_model, vocab = 2, 9, 32, 600

    key = jax.random.PRNGKey(0)
    kx, kw, kb = jax.random.split(key, 3)

    x = jax.random.normal(kx, (batch, seq, d_model), dtype=jnp.float32)
    # Deterministic init of nn.Linear(d_model, vocab) parameters.
    weight = jax.random.normal(kw, (vocab, d_model), dtype=jnp.float32) * (
        1.0 / d_model ** 0.5)
    bias = jax.random.normal(kb, (vocab,), dtype=jnp.float32) * 0.01

    ref = jax.nn.log_softmax(x @ weight.T + bias, axis=-1)

    # f32 path (strict tolerance).
    w_t, b2d = prepare_generator_params(weight, bias)
    out = generator_forward(x, w_t, b2d, tile_m=16, tile_v=256)
    jax.block_until_ready(out)
    assert out.shape == (batch, seq, vocab)
    assert jnp.allclose(out, ref, atol=1e-4, rtol=1e-4), (
        float(jnp.max(jnp.abs(out - ref))))

    # bf16 streamed parameters/activations (MXU-native inputs, f32 accumulate).
    w_t16, b2d16 = prepare_generator_params(weight, bias, dtype=jnp.bfloat16)
    out16 = generator_forward(x, w_t16, b2d16, tile_v=256)
    jax.block_until_ready(out16)
    assert jnp.allclose(out16, ref, atol=1e-1, rtol=0.0), (
        float(jnp.max(jnp.abs(out16 - ref))))

    print("KERNEL_OK")
</pallas_src>

<mosaic_0001>
module attributes {stable_mosaic.version = 11 : i64} {
  func.func @_generator_kernel(%arg0: i32, %arg1: i32, %arg2: memref<16x32xf32, #tpu.memory_space<vmem>>, %arg3: memref<32x256xf32, #tpu.memory_space<vmem>>, %arg4: memref<1x256xf32, #tpu.memory_space<vmem>>, %arg5: memref<16x768xf32, #tpu.memory_space<vmem>>, %arg6: memref<16x1xf32, #tpu.memory_space<vmem>>, %arg7: memref<16x1xf32, #tpu.memory_space<vmem>>) attributes {dimension_semantics = [#tpu.dimension_semantics<parallel>, #tpu.dimension_semantics<arbitrary>], iteration_bounds = array<i64: 2, 3>, scalar_prefetch = 0 : i64, scratch_operands = 2 : i64, tpu.core_type = #tpu.core_type<tc>, window_params = [{transform_indices = @transform_0, window_bounds = array<i64: 16, 32>}, {transform_indices = @transform_1, window_bounds = array<i64: 32, 256>}, {transform_indices = @transform_2, window_bounds = array<i64: 1, 256>}, {transform_indices = @transform_3, window_bounds = array<i64: 16, 768>}]} {
    %c0_i32 = arith.constant 0 : i32
    %0 = arith.cmpi eq, %arg1, %c0_i32 : i32
    %1 = arith.extui %0 : i1 to i32
    %c0_i32_0 = arith.constant 0 : i32
    %2 = arith.cmpi ne, %1, %c0_i32_0 : i32
    scf.if %2 {
      %cst_18 = arith.constant 0xFF800000 : f32
      %32 = vector.broadcast %cst_18 : f32 to vector<16x1xf32>
      %c0_19 = arith.constant 0 : index
      %c0_20 = arith.constant 0 : index
      %33 = vector.load %arg6[%c0_19, %c0_20] : memref<16x1xf32, #tpu.memory_space<vmem>>, vector<16x1xf32>
      tpu.vector_store %arg6[%c0_19, %c0_20], %32 {strides = array<i32>} : memref<16x1xf32, #tpu.memory_space<vmem>>, vector<16x1xf32>,
      %cst_21 = arith.constant 0.000000e+00 : f32
      %34 = vector.broadcast %cst_21 : f32 to vector<16x1xf32>
      %c0_22 = arith.constant 0 : index
      %c0_23 = arith.constant 0 : index
      %35 = vector.load %arg7[%c0_22, %c0_23] : memref<16x1xf32, #tpu.memory_space<vmem>>, vector<16x1xf32>
      tpu.vector_store %arg7[%c0_22, %c0_23], %34 {strides = array<i32>} : memref<16x1xf32, #tpu.memory_space<vmem>>, vector<16x1xf32>,
    } else {
    }
    %c0 = arith.constant 0 : index
    %c0_1 = arith.constant 0 : index
    %3 = vector.load %arg2[%c0, %c0_1] : memref<16x32xf32, #tpu.memory_space<vmem>>, vector<16x32xf32>
    %c0_2 = arith.constant 0 : index
    %c0_3 = arith.constant 0 : index
    %4 = vector.load %arg3[%c0_2, %c0_3] : memref<32x256xf32, #tpu.memory_space<vmem>>, vector<32x256xf32>
    %cst = arith.constant dense<0.000000e+00> : vector<16x256xf32>
    %5 = tpu.matmul %3, %4, %cst {dimension_numbers = #tpu.dot_dimension_numbers<[1], [0], [0], [1], [0, 0, 1, 1], [], []>} : vector<16x32xf32>, vector<32x256xf32>, vector<16x256xf32> -> vector<16x256xf32>
    %c0_4 = arith.constant 0 : index
    %c0_5 = arith.constant 0 : index
    %6 = vector.load %arg4[%c0_4, %c0_5] : memref<1x256xf32, #tpu.memory_space<vmem>>, vector<1x256xf32>
    %7 = vector.broadcast %6 : vector<1x256xf32> to vector<16x256xf32>
    %8 = arith.addf %5, %7 : vector<16x256xf32>
    %c256_i32 = arith.constant 256 : i32
    %9 = arith.muli %arg1, %c256_i32 : i32
    %10 = tpu.assume_multiple %9, 128 : i32
    %c0_6 = arith.constant 0 : index
    %11 = arith.index_cast %10 : i32 to index
    %12 = vector.load %arg5[%c0_6, %11] : memref<16x768xf32, #tpu.memory_space<vmem>>, vector<16x256xf32>
    tpu.vector_store %arg5[%c0_6, %11], %8 {strides = array<i32>} : memref<16x768xf32, #tpu.memory_space<vmem>>, vector<16x256xf32>,
    %c0_7 = arith.constant 0 : index
    %c0_8 = arith.constant 0 : index
    %13 = vector.load %arg6[%c0_7, %c0_8] : memref<16x1xf32, #tpu.memory_space<vmem>>, vector<16x1xf32>
    %cst_9 = arith.constant dense<0xFF800000> : vector<16xf32>
    %14 = vector.multi_reduction <maximumf>, %8, %cst_9 [1] : vector<16x256xf32> to vector<16xf32>
    %15 = vector.shape_cast %14 : vector<16xf32> to vector<16x1xf32>
    %16 = arith.maximumf %13, %15 : vector<16x1xf32>
    %c0_10 = arith.constant 0 : index
    %c0_11 = arith.constant 0 : index
    %17 = vector.load %arg7[%c0_10, %c0_11] : memref<16x1xf32, #tpu.memory_space<vmem>>, vector<16x1xf32>
    %18 = arith.subf %13, %16 : vector<16x1xf32>
    %19 = math.exp %18 : vector<16x1xf32>
    %20 = arith.mulf %17, %19 : vector<16x1xf32>
    %21 = vector.broadcast %16 : vector<16x1xf32> to vector<16x256xf32>
    %22 = arith.subf %8, %21 : vector<16x256xf32>
    %23 = math.exp %22 : vector<16x256xf32>
    %cst_12 = arith.constant dense<0.000000e+00> : vector<16xf32>
    %24 = vector.multi_reduction <add>, %23, %cst_12 [1] : vector<16x256xf32> to vector<16xf32>
    %25 = vector.shape_cast %24 : vector<16xf32> to vector<16x1xf32>
    %26 = arith.addf %20, %25 : vector<16x1xf32>
    %c0_13 = arith.constant 0 : index
    %c0_14 = arith.constant 0 : index
    %27 = vector.load %arg7[%c0_13, %c0_14] : memref<16x1xf32, #tpu.memory_space<vmem>>, vector<16x1xf32>
    tpu.vector_store %arg7[%c0_13, %c0_14], %26 {strides = array<i32>} : memref<16x1xf32, #tpu.memory_space<vmem>>, vector<16x1xf32>,
    %c0_15 = arith.constant 0 : index
    %c0_16 = arith.constant 0 : index
    %28 = vector.load %arg6[%c0_15, %c0_16] : memref<16x1xf32, #tpu.memory_space<vmem>>, vector<16x1xf32>
    tpu.vector_store %arg6[%c0_15, %c0_16], %16 {strides = array<i32>} : memref<16x1xf32, #tpu.memory_space<vmem>>, vector<16x1xf32>,
    %c2_i32 = arith.constant 2 : i32
    %29 = arith.cmpi eq, %arg1, %c2_i32 : i32
    %30 = arith.extui %29 : i1 to i32
    %c0_i32_17 = arith.constant 0 : i32
    %31 = arith.cmpi ne, %30, %c0_i32_17 : i32
    scf.if %31 {
      %c0_18 = arith.constant 0 : index
      %c0_19 = arith.constant 0 : index
      %32 = vector.load %arg6[%c0_18, %c0_19] : memref<16x1xf32, #tpu.memory_space<vmem>>, vector<16x1xf32>
      %c0_20 = arith.constant 0 : index
      %c0_21 = arith.constant 0 : index
      %33 = vector.load %arg7[%c0_20, %c0_21] : memref<16x1xf32, #tpu.memory_space<vmem>>, vector<16x1xf32>
      %34 = math.log %33 : vector<16x1xf32>
      %35 = arith.addf %32, %34 : vector<16x1xf32>
      %c0_i32_22 = arith.constant 0 : i32
      %c3_i32 = arith.constant 3 : i32
      %36 = arith.addi %c0_i32_22, %c3_i32 : i32
      %c1_i32 = arith.constant 1 : i32
      scf.for %arg8 = %c0_i32_22 to %36 step %c1_i32  : i32 {
        %c256_i32_24 = arith.constant 256 : i32
        %37 = arith.muli %arg8, %c256_i32_24 : i32
        %38 = tpu.assume_multiple %37, 128 : i32
        %c0_25 = arith.constant 0 : index
        %39 = arith.index_cast %38 : i32 to index
        %40 = vector.load %arg5[%c0_25, %39] : memref<16x768xf32, #tpu.memory_space<vmem>>, vector<16x256xf32>
        %41 = vector.broadcast %35 : vector<16x1xf32> to vector<16x256xf32>
        %42 = arith.subf %40, %41 : vector<16x256xf32>
        %c0_26 = arith.constant 0 : index
        %43 = arith.index_cast %38 : i32 to index
        %44 = vector.load %arg5[%c0_26, %43] : memref<16x768xf32, #tpu.memory_space<vmem>>, vector<16x256xf32>
        tpu.vector_store %arg5[%c0_26, %43], %42 {strides = array<i32>} : memref<16x768xf32, #tpu.memory_space<vmem>>, vector<16x256xf32>,
      }
      %c3_i32_23 = arith.constant 3 : i32
    } else {
    }
    return
  }
  func.func @transform_0(%arg0: i32, %arg1: i32) -> (i32, i32) {
    %c0_i32 = arith.constant 0 : i32
    %c0_i32_0 = arith.constant 0 : i32
    return %arg0, %c0_i32 : i32, i32
  }
  func.func @transform_1(%arg0: i32, %arg1: i32) -> (i32, i32) {
    %c0_i32 = arith.constant 0 : i32
    %c0_i32_0 = arith.constant 0 : i32
    return %c0_i32, %arg1 : i32, i32
  }
  func.func @transform_2(%arg0: i32, %arg1: i32) -> (i32, i32) {
    %c0_i32 = arith.constant 0 : i32
    %c0_i32_0 = arith.constant 0 : i32
    return %c0_i32, %arg1 : i32, i32
  }
  func.func @transform_3(%arg0: i32, %arg1: i32) -> (i32, i32) {
    %c0_i32 = arith.constant 0 : i32
    %c0_i32_0 = arith.constant 0 : i32
    return %arg0, %c0_i32 : i32, i32
  }
}

</mosaic_0001>

<llo_original>
// kernel: generator_forward.1
$region0: #{generator_forward.1}
  #allocation0 [shape = 'u32[]', space=smem, size = 0x4, offset = 0x4, fixed_abs, tag = 'smem constant byte address 0x4 - core index']
  #allocation1 [shape = 'u32[72,128]{1,0:T(1,128)}', space=vmem, size = 0x9000, scoped, tag = 'internal scratch']
  #allocation2 [shape = 'f32[16,1]{1,0:T(8,128)}', space=vmem, size = 0x2000, scoped, tag = 'scratch operand']
  #allocation3 [shape = 'f32[16,1]{1,0:T(8,128)}', space=vmem, size = 0x2000, scoped, tag = 'scratch operand']
  %s0 = inlined_call_operand.vmem [shape: f32[32,32], index: 0, kind: input, shape index: {}]
  %s1 = inlined_call_operand.vmem [shape: f32[32,768], index: 1, kind: input, shape index: {}]
  %s2 = inlined_call_operand.vmem [shape: f32[1,768], index: 2, kind: input, shape index: {}]
  %s3 = inlined_call_operand.vmem [shape: f32[32,768], index: 3, kind: output, shape index: {}]
  %s4 = sld [smem:[#allocation0]]
  $region83: #{generator_forward.1} parent=0
    _
  %s6 = ssub.s32 1, %s4
  %s7 = scalar_select 0, %s6, %s4
  $region1: #{generator_forward.1} parent=0
    #allocation4 [shape = 'u8[65536]{0}', space=vmem, size = 0x10000, scoped, tag = 'input window, operand 1']
    loop: start=0, step=1, limit=8
    $region2: #{generator_forward.1} parent=1 // loop_pre_header
      _
    $region3: #{generator_forward.1} parent=1 // loop_header
      %s9 = sphi 0, %s13
      %p10 = scmp.ge.s32.totalorder %s9, 8
      %s16 = sphi 0, %s28
      %s17 = sphi 0, %s24
      %s18 = sphi 0, %s16
      %s19 = sphi 0, %s17
      %s20 = sphi 0, %s18
      %s21 = sphi 0, %s19
      %s31 = sphi 0, %s33
      %s34 = sphi 0, %s31
      %s35 = sphi 0, %s34
      %s51 = sphi 0, %s35
      %s57 = sphi 0, %s59
      %s60 = sphi 0, %s57
      %s61 = sphi 0, %s60
      %s77 = sphi 0, %s61
      %s83 = sphi 0, %s85
      %s86 = sphi 0, %s83
      %s87 = sphi 0, %s86
      %s103 = sphi 0, %s87
      %s109 = sphi 0, %s111
      %s112 = sphi 0, %s109
      %s113 = sphi 0, %s112
      %s129 = sphi 0, %s113
    $region4: #{generator_forward.1} parent=1 // loop_header_branch
      %12 = sbr.rel (%p10) target = $region8
    $region5: #{generator_forward.1} parent=1 // loop_body
      %s14 = ssub.s32 %s9, 1
      %s15 = ssub.s32 %s9, 2
      %s22 = sadd.s32 1, %s17
      %p23 = scmp.ge.s32.totalorder %s22, 3
      %s24 = scalar_select %p23, 0, %s22
      %s25 = sadd.s32 1, %s16
      %s26 = scalar_select %p23, %s25, %s16
      %p27 = scmp.ge.s32.totalorder %s26, 2
      %s28 = scalar_select %p27, 0, %s26
      %s29 = ssub.s32 %s16, %s28
      %p30 = scmp.eq.s32.totalorder %s29, 0
      %s32 = sadd.s32 %s31, 1
      %s33 = scalar_select %p30, %s31, %s32
      %p36 = pneg %p30
      %p37 = scmp.eq.s32.totalorder %s9, 5
      %p38 = por %p36, %p37
      %p39 = scmp.ne.s32.totalorder %s31, %s34
      %p40 = scmp.eq.s32.totalorder %s9, 0
      %p41 = por %p39, %p40
      %p42 = scmp.ne.s32.totalorder %s31, %s34
      %p43 = scmp.eq.s32.totalorder %s14, 5
      %p44 = por %p42, %p43
      %p45 = scmp.ne.s32.totalorder %s34, %s35
      %p46 = scmp.eq.s32.totalorder %s14, 0
      %p47 = por %p45, %p46
      %p48 = scmp.ne.s32.totalorder %s34, %s35
      %p49 = scmp.eq.s32.totalorder %s15, 5
      %p50 = por %p48, %p49
      %p52 = scmp.ne.s32.totalorder %s35, %s51
      %p53 = scmp.eq.s32.totalorder %s15, 0
      %p54 = por %p52, %p53
      %s55 = ssub.s32 %s17, %s24
      %p56 = scmp.eq.s32.totalorder %s55, 0
      %s58 = sadd.s32 %s57, 1
      %s59 = scalar_select %p56, %s57, %s58
      %p62 = pneg %p56
      %p63 = scmp.eq.s32.totalorder %s9, 5
      %p64 = por %p62, %p63
      %p65 = scmp.ne.s32.totalorder %s57, %s60
      %p66 = scmp.eq.s32.totalorder %s9, 0
      %p67 = por %p65, %p66
      %p68 = scmp.ne.s32.totalorder %s57, %s60
      %p69 = scmp.eq.s32.totalorder %s14, 5
      %p70 = por %p68, %p69
      %p71 = scmp.ne.s32.totalorder %s60, %s61
      %p72 = scmp.eq.s32.totalorder %s14, 0
      %p73 = por %p71, %p72
      %p74 = scmp.ne.s32.totalorder %s60, %s61
      %p75 = scmp.eq.s32.totalorder %s15, 5
      %p76 = por %p74, %p75
      %p78 = scmp.ne.s32.totalorder %s61, %s77
      %p79 = scmp.eq.s32.totalorder %s15, 0
      %p80 = por %p78, %p79
      %s81 = ssub.s32 %s17, %s24
      %p82 = scmp.eq.s32.totalorder %s81, 0
      %s84 = sadd.s32 %s83, 1
      %s85 = scalar_select %p82, %s83, %s84
      %p88 = pneg %p82
      %p89 = scmp.eq.s32.totalorder %s9, 5
      %p90 = por %p88, %p89
      %p91 = scmp.ne.s32.totalorder %s83, %s86
      %p92 = scmp.eq.s32.totalorder %s9, 0
      %p93 = por %p91, %p92
      %p94 = scmp.ne.s32.totalorder %s83, %s86
      %p95 = scmp.eq.s32.totalorder %s14, 5
      %p96 = por %p94, %p95
      %p97 = scmp.ne.s32.totalorder %s86, %s87
      %p98 = scmp.eq.s32.totalorder %s14, 0
      %p99 = por %p97, %p98
      %p100 = scmp.ne.s32.totalorder %s86, %s87
      %p101 = scmp.eq.s32.totalorder %s15, 5
      %p102 = por %p100, %p101
      %p104 = scmp.ne.s32.totalorder %s87, %s103
      %p105 = scmp.eq.s32.totalorder %s15, 0
      %p106 = por %p104, %p105
      %s107 = ssub.s32 %s16, %s28
      %p108 = scmp.eq.s32.totalorder %s107, 0
      %s110 = sadd.s32 %s109, 1
      %s111 = scalar_select %p108, %s109, %s110
      %p114 = pneg %p108
      %p115 = scmp.eq.s32.totalorder %s9, 5
      %p116 = por %p114, %p115
      %p117 = scmp.ne.s32.totalorder %s109, %s112
      %p118 = scmp.eq.s32.totalorder %s9, 0
      %p119 = por %p117, %p118
      %p120 = scmp.ne.s32.totalorder %s109, %s112
      %p121 = scmp.eq.s32.totalorder %s14, 5
      %p122 = por %p120, %p121
      %p123 = scmp.ne.s32.totalorder %s112, %s113
      %p124 = scmp.eq.s32.totalorder %s14, 0
      %p125 = por %p123, %p124
      %p126 = scmp.ne.s32.totalorder %s112, %s113
      %p127 = scmp.eq.s32.totalorder %s15, 5
      %p128 = por %p126, %p127
      %p130 = scmp.ne.s32.totalorder %s113, %s129
      %p131 = scmp.eq.s32.totalorder %s15, 0
      %p132 = por %p130, %p131
      %p133 = scmp.le.s32.totalorder 1, %s9
      %p134 = scmp.lt.s32.totalorder %s9, 7
      %p135 = pnand %p133, %p134
      %p136 = pneg %p135
      // Predicated region
      $region9: #{generator_forward.1} parent=5 // pred_check
        _
      $region10: #{generator_forward.1} parent=5 // pred_check_branch
        %138 = sbr.rel (%p135) target = $region12
      $region11: #{generator_forward.1} parent=5 // pred_region
        %s139 = ssub.s32 %s9, 1
      $region12: #{generator_forward.1} parent=5 // pred_fallthru
        _
      %p140 = scmp.lt.s32.totalorder %s9, 6
      // Predicated region
      $region13: #{generator_forward.1} parent=5 // pred_check
        %p141 = pneg %p140
      $region14: #{generator_forward.1} parent=5 // pred_check_branch
        %143 = sbr.rel (%p141) target = $region16
      $region15: #{generator_forward.1} parent=5 // pred_region
        // Predicated region
        $region17: #{generator_forward.1} parent=15 // pred_check
          %p144 = pneg %p41
        $region18: #{generator_forward.1} parent=15 // pred_check_branch
          %146 = sbr.rel (%p144) target = $region20
        $region19: #{generator_forward.1} parent=15 // pred_region
          %s147 = smul.u32 2, %s16
          %p148 = scmp.lt.s32.totalorder %s147, 3
          %s149 = scalar_select %p148, %s147, 3
          %s150 = smul.addr %s149, 8
          %s151 = scalar_lea.vmem %s0, %s150
          %s152 = smul.u32 2, %s16
        $region20: #{generator_forward.1} parent=15 // pred_fallthru
          _
        // Predicated region
        $region21: #{generator_forward.1} parent=15 // pred_check
          %p153 = pneg %p67
        $region22: #{generator_forward.1} parent=15 // pred_check_branch
          %155 = sbr.rel (%p153) target = $region24
        $region23: #{generator_forward.1} parent=15 // pred_region
          %s156 = sand.u32 %s57, 1
          %s157 = sand.u32 %s57, 1
          %s158 = smul.addr %s157, 64
          %s159 = scalar_lea.vmem [#allocation4], %s158
          %s160 = smul.u32 2, %s17
          %s161 = smul.addr %s160, 8
          %s162 = scalar_lea.vmem %s1, %s161
          // Predicated region
          $region25: #{generator_forward.1} parent=23 // pred_check
            _
          $region26: #{generator_forward.1} parent=23 // pred_check_branch
            %164 = sbr.rel (0) target = $region28
          $region27: #{generator_forward.1} parent=23 // pred_region
            // Predicated region
            $region29: #{generator_forward.1} parent=27 // pred_check
              _
            $region30: #{generator_forward.1} parent=27 // pred_check_branch
              %166 = sbr.rel (0) target = $region32
            $region31: #{generator_forward.1} parent=27 // pred_region
              loop: start=0, step=1, limit=1
              $region33: #{generator_forward.1} parent=31 // loop_pre_header
                _
              $region34: #{generator_forward.1} parent=31 // loop_header
                %s168 = sphi 0, %s172
                %p169 = scmp.ge.s32.totalorder %s168, 1
                %s173 = sphi %s162, %s162
                %s174 = sphi %s159, %s159
              $region35: #{generator_forward.1} parent=31 // loop_header_branch
                %171 = sbr.rel (%p169) target = $region39
              $region36: #{generator_forward.1} parent=31 // loop_body
                %v175 = vld [vmem:[%s173] sm:$0xff]
                %176 = vst [vmem:[%s174] sm:$0xff] %v175
                %v177 = vld [vmem:[%s173 + $0x8] sm:$0xff]
                %178 = vst [vmem:[%s174 + $0x8] sm:$0xff] %v177
                %v179 = vld [vmem:[%s173 + $0x30] sm:$0xff]
                %180 = vst [vmem:[%s174 + $0x10] sm:$0xff] %v179
                %v181 = vld [vmem:[%s173 + $0x38] sm:$0xff]
                %182 = vst [vmem:[%s174 + $0x18] sm:$0xff] %v181
                %v183 = vld [vmem:[%s173 + $0x60] sm:$0xff]
                %184 = vst [vmem:[%s174 + $0x20] sm:$0xff] %v183
                %v185 = vld [vmem:[%s173 + $0x68] sm:$0xff]
                %186 = vst [vmem:[%s174 + $0x28] sm:$0xff] %v185
                %v187 = vld [vmem:[%s173 + $0x90] sm:$0xff]
                %188 = vst [vmem:[%s174 + $0x30] sm:$0xff] %v187
                %v189 = vld [vmem:[%s173 + $0x98] sm:$0xff]
                %190 = vst [vmem:[%s174 + $0x38] sm:$0xff] %v189
              $region37: #{generator_forward.1} parent=31 // loop_footer
                %s172 = sadd.s32 1, %s168
              $region38: #{generator_forward.1} parent=31 // loop_footer_branch
                %167 = sbr.rel target = $region34
              $region39: #{generator_forward.1} parent=31 // loop_exit
                _
            $region32: #{generator_forward.1} parent=27 // pred_fallthru
              _
            // Predicated region
            $region40: #{generator_forward.1} parent=27 // pred_check
              _
            $region41: #{generator_forward.1} parent=27 // pred_check_branch
              %192 = sbr.rel target = $region43
            $region42: #{generator_forward.1} parent=27 // pred_region
              _
            $region43: #{generator_forward.1} parent=27 // pred_fallthru
              _
          $region28: #{generator_forward.1} parent=23 // pred_fallthru
            _
          %193 = vnop
        $region24: #{generator_forward.1} parent=15 // pred_fallthru
          _
        // Predicated region
        $region44: #{generator_forward.1} parent=15 // pred_check
          %p194 = pneg %p93
        $region45: #{generator_forward.1} parent=15 // pred_check_branch
          %196 = sbr.rel (%p194) target = $region47
        $region46: #{generator_forward.1} parent=15 // pred_region
          %s197 = smul.u32 2, %s17
          %p198 = scmp.lt.s32.totalorder %s197, 5
          %s199 = scalar_select %p198, %s197, 5
          %s200 = scalar_lea.vmem %s2, %s199
          %s201 = smul.u32 2, %s17
        $region47: #{generator_forward.1} parent=15 // pred_fallthru
          _
      $region16: #{generator_forward.1} parent=5 // pred_fallthru
        _
      %p202 = scmp.le.s32.totalorder 1, %s9
      %p203 = scmp.lt.s32.totalorder %s9, 7
      %p204 = pnand %p202, %p203
      %p205 = pneg %p204
      // Predicated region
      $region48: #{generator_forward.1} parent=5 // pred_check
        _
      $region49: #{generator_forward.1} parent=5 // pred_check_branch
        %207 = sbr.rel (%p204) target = $region51
      $region50: #{generator_forward.1} parent=5 // pred_region
        %s208 = ssub.s32 %s9, 1
        %s209 = sand.u32 %s60, 1
        %s210 = sand.u32 %s60, 1
        %s211 = smul.addr %s210, 64
        %s212 = scalar_lea.vmem [#allocation4], %s211
        // Predicated region
        $region52: #{generator_forward.1} parent=50 // pred_check
          %p213 = pneg %p73
        $region53: #{generator_forward.1} parent=50 // pred_check_branch
          %215 = sbr.rel (%p213) target = $region55
        $region54: #{generator_forward.1} parent=50 // pred_region
          _
        $region55: #{generator_forward.1} parent=50 // pred_fallthru
          _
        %s216 = smul.u32 2, %s18
        %p217 = scmp.lt.s32.totalorder %s216, 3
        %s218 = scalar_select %p217, %s216, 3
        %s219 = smul.addr %s218, 8
        %s220 = scalar_lea.vmem %s0, %s219
        %p221 = pneg %p47
        %p222 = pneg %p44
        %s223 = sand.u32 %s60, 1
        %s224 = sand.u32 %s60, 1
        %s225 = smul.addr %s224, 64
        %s226 = scalar_lea.vmem [#allocation4], %s225
        %p227 = pneg %p73
        %p228 = pneg %p70
        %s229 = smul.u32 2, %s19
        %p230 = scmp.lt.s32.totalorder %s229, 5
        %s231 = scalar_select %p230, %s229, 5
        %s232 = scalar_lea.vmem %s2, %s231
        %p233 = pneg %p99
        %p234 = pneg %p96
        %p235 = pneg %p125
        %p236 = pneg %p122
        %s237 = smul.u32 2, %s18
        %p238 = scmp.lt.s32.totalorder %s237, 3
        %s239 = scalar_select %p238, %s237, 3
        %s240 = smul.addr %s239, 6
        %s241 = smul.addr %s240, 8
        %s242 = scalar_lea.vmem %s3, %s241
        %s243 = smul.u32 2, %s18
        %p244 = scmp.lt.s32.totalorder %s243, 3
        %s245 = scalar_select %p244, %s243, 3
        %s246 = smul.addr %s245, 8
        %s247 = scalar_lea.vmem %s0, %s246
        %s248 = smul.u32 2, %s18
        %s249 = smul.u32 2, %s19
        %s250 = smul.u32 2, %s19
        %p251 = scmp.lt.s32.totalorder %s250, 5
        %s252 = scalar_select %p251, %s250, 5
        %s253 = scalar_lea.vmem %s2, %s252
        %s254 = smul.u32 2, %s19
        %s255 = smul.u32 2, %s18
        %p256 = scmp.lt.s32.totalorder %s255, 3
        %s257 = scalar_select %p256, %s255, 3
        %s258 = smul.addr %s257, 6
        %s259 = smul.addr %s258, 8
        %s260 = scalar_lea.vmem %s3, %s259
        %s261 = smul.u32 2, %s18
        %p262 = scmp.eq.s32.totalorder %s19, 0
        // Predicated region
        $region56: #{generator_forward.1} parent=50 // pred_check
          %p263 = pneg %p262
        $region57: #{generator_forward.1} parent=50 // pred_check_branch
          %265 = sbr.rel (%p263) target = $region59
        $region58: #{generator_forward.1} parent=50 // pred_region
          %vm266 = vcmask 7168
          %267 = vst.msk [vmem:[#allocation2] sm:$0xff] %vm266, -inf
          %268 = vst.msk [vmem:[#allocation2 + $0x8] sm:$0xff] %vm266, -inf
          %269 = vst.msk [vmem:[#allocation3] sm:$0xff] %vm266, 0.0
          %270 = vst.msk [vmem:[#allocation3 + $0x8] sm:$0xff] %vm266, 0.0
        $region59: #{generator_forward.1} parent=50 // pred_fallthru
          _
        %v271 = vld [vmem:[%s247] sm:$0xff]
        %v272 = vld [vmem:[%s247 + $0x8] sm:$0xff]
        %v273 = vld [vmem:[%s212] sm:$0xff]
        %v274 = vld [vmem:[%s212 + $0x8] sm:$0xff]
        %v275 = vld [vmem:[%s212 + $0x10] sm:$0xff]
        %v276 = vld [vmem:[%s212 + $0x18] sm:$0xff]
        %v277 = vld [vmem:[%s212 + $0x20] sm:$0xff]
        %v278 = vld [vmem:[%s212 + $0x28] sm:$0xff]
        %v279 = vld [vmem:[%s212 + $0x30] sm:$0xff]
        %v280 = vld [vmem:[%s212 + $0x38] sm:$0xff]
        %v281 = vld [vmem:[%s253] sm:$0x3]
        %v283 = vperm.slane %v281, 0
        %v284 = vperm.slane %v281, 1
        %vm287 = vcmask 261120
        %v289 = vsel %vm287, %v271, 0
        %v292 = vsel %vm287, %v272, 0
        %294 = vmatpush.msra.mxu0 0.0
        %295 = vmatpush.msra.mxu0 0.0
        %296 = vmatpush.msra.mxu0 0.0
        %297 = vmatpush.msra.mxu0 0.0
        %298 = vmatpush.msra.mxu0 0.0
        %299 = vmatpush.msra.mxu0 0.0
        %300 = vmatpush.msra.mxu0 0.0
        %301 = vmatpush.msra.mxu0 0.0
        %302 = vmatpush.msra.mxu0 0.0
        %303 = vmatpush.msra.mxu0 0.0
        %304 = vmatpush.msra.mxu0 0.0
        %305 = vmatpush.msra.mxu0 0.0
        %306 = vmatpush.msra.mxu0 %v279
        %307 = vmatpush.msra.mxu0 %v277
        %308 = vmatpush.msra.mxu0 %v275
        %309 = vmatpush.msra.mxu0 %v273
        %310 = vmatmul.f32.gmra.mxu0 %v289
        %v311 = vpop.f32.mrf.mxu0
        %v312 = vadd.f32 %v283, %v311
        %313 = vmatmul.f32.gmra.mxu0 %v292
        %v314 = vpop.f32.mrf.mxu0
        %v315 = vadd.f32 %v283, %v314
        %316 = vdwg.mxu0
        %317 = vmatpush.msra.mxu0 0.0
        %318 = vmatpush.msra.mxu0 0.0
        %319 = vmatpush.msra.mxu0 0.0
        %320 = vmatpush.msra.mxu0 0.0
        %321 = vmatpush.msra.mxu0 0.0
        %322 = vmatpush.msra.mxu0 0.0
        %323 = vmatpush.msra.mxu0 0.0
        %324 = vmatpush.msra.mxu0 0.0
        %325 = vmatpush.msra.mxu0 0.0
        %326 = vmatpush.msra.mxu0 0.0
        %327 = vmatpush.msra.mxu0 0.0
        %328 = vmatpush.msra.mxu0 0.0
        %329 = vmatpush.msra.mxu0 %v280
        %330 = vmatpush.msra.mxu0 %v278
        %331 = vmatpush.msra.mxu0 %v276
        %332 = vmatpush.msra.mxu0 %v274
        %333 = vmatmul.f32.gmra.mxu0 %v289
        %v334 = vpop.f32.mrf.mxu0
        %v335 = vadd.f32 %v284, %v334
        %336 = vmatmul.f32.gmra.mxu0 %v292
        %v337 = vpop.f32.mrf.mxu0
        %v338 = vadd.f32 %v284, %v337
        %339 = vdwg.mxu0
        %s340 = smul.u32 %s19, 256
        %s341 = sshra.s32 %s340, 7
        %s342 = sand.u32 %s340, 127
        %s343 = smul.addr %s341, 8
        %s344 = scalar_lea.vmem %s260, %s343
        %345 = vst [vmem:[%s344] sm:$0xff] %v312
        %346 = vst [vmem:[%s344 + $0x8] sm:$0xff] %v335
        %347 = vst [vmem:[%s344 + $0x30] sm:$0xff] %v315
        %348 = vst [vmem:[%s344 + $0x38] sm:$0xff] %v338
        %v349 = vld [vmem:[#allocation2] sm:$0xff]
        %v350 = vld [vmem:[#allocation2 + $0x8] sm:$0xff]
        %v351 = vmax.f32 %v312, %v335
        %352 = vmax.xlane.f32.xlu0 %v351
        %v353 = vpop.xlane.xlu0 %352
        %v354 = vmax.f32 %v315, %v338
        %355 = vmax.xlane.f32.xlu0 %v354
        %v356 = vpop.xlane.xlu0 %355
        %v357 = vmax.f32 %v349, %v353
        %v358 = vmax.f32 %v350, %v356
        %v359 = vld [vmem:[#allocation3] sm:$0xff]
        %v360 = vld [vmem:[#allocation3 + $0x8] sm:$0xff]
        %v361 = vsub.f32 %v349, %v357
        %v362 = vsub.f32 %v350, %v358
        %v363 = vmul.f32 %v361, 1.442695
        %v364 = vpow.pop %v363
        %v365 = vmul.f32 %v362, 1.442695
        %v366 = vpow.pop %v365
        %v367 = vmul.f32 %v359, %v364
        %v368 = vmul.f32 %v360, %v366
        %370 = vset.pattern.permute.xlu0 0
        %371 = vperm.xlu0 %370, %v357
        %v372 = vpop.permute.xlu0 %371
        %375 = vset.pattern.permute.xlu0 0
        %376 = vperm.xlu0 %375, %v358
        %v377 = vpop.permute.xlu0 %376
        %v379 = vsub.f32 %v312, %v372
        %v380 = vsub.f32 %v335, %v372
        %v381 = vsub.f32 %v315, %v377
        %v382 = vsub.f32 %v338, %v377
        %v383 = vmul.f32 %v379, 1.442695
        %v384 = vpow.pop %v383
        %v385 = vmul.f32 %v380, 1.442695
        %v386 = vpow.pop %v385
        %v387 = vmul.f32 %v381, 1.442695
        %v388 = vpow.pop %v387
        %v389 = vmul.f32 %v382, 1.442695
        %v390 = vpow.pop %v389
        %v391 = vadd.f32 %v384, %v386
        %392 = vadd.xlane.f32.xlu0 %v391
        %v393 = vpop.xlane.xlu0 %392
        %v394 = vadd.f32 %v388, %v390
        %395 = vadd.xlane.f32.xlu0 %v394
        %v396 = vpop.xlane.xlu0 %395
        %v397 = vadd.f32 %v367, %v393
        %v398 = vadd.f32 %v368, %v396
        %vm399 = vcmask 7168
        %400 = vst.msk [vmem:[#allocation3] sm:$0xff] %vm399, %v397
        %401 = vst.msk [vmem:[#allocation3 + $0x8] sm:$0xff] %vm399, %v398
        %402 = vst.msk [vmem:[#allocation2] sm:$0xff] %vm399, %v357
        %403 = vst.msk [vmem:[#allocation2 + $0x8] sm:$0xff] %vm399, %v358
        %p404 = scmp.eq.s32.totalorder %s19, 2
        // Predicated region
        $region60: #{generator_forward.1} parent=50 // pred_check
          %p405 = pneg %p404
        $region61: #{generator_forward.1} parent=50 // pred_check_branch
          %407 = sbr.rel (%p405) target = $region63
        $region62: #{generator_forward.1} parent=50 // pred_region
          %v408 = vld [vmem:[#allocation2] sm:$0xff]
          %v409 = vld [vmem:[#allocation2 + $0x8] sm:$0xff]
          %v410 = vld [vmem:[#allocation3] sm:$0xff]
          %v411 = vld [vmem:[#allocation3 + $0x8] sm:$0xff]
          %v412 = vlog2.pop %v410
          %v413 = vmul.f32 %v412, 0.6931472
          %v414 = vlog2.pop %v411
          %v415 = vmul.f32 %v414, 0.6931472
          %v416 = vadd.f32 %v408, %v413
          %v417 = vadd.f32 %v409, %v415
          loop: start=0, step=1, limit=3
          $region64: #{generator_forward.1} parent=62 // loop_pre_header
            _
          $region65: #{generator_forward.1} parent=62 // loop_header
            %s419 = sphi 0, %s423
            %p420 = scmp.ge.s32.totalorder %s419, 3
          $region66: #{generator_forward.1} parent=62 // loop_header_branch
            %422 = sbr.rel (%p420) target = $region70
          $region67: #{generator_forward.1} parent=62 // loop_body
            %s424 = smul.u32 %s419, 256
            %s425 = sshra.s32 %s424, 7
            %s426 = sand.u32 %s424, 127
            %s427 = smul.addr %s425, 8
            %s428 = scalar_lea.vmem %s260, %s427
            %v429 = vld [vmem:[%s428] sm:$0xff]
            %v430 = vld [vmem:[%s428 + $0x8] sm:$0xff]
            %v431 = vld [vmem:[%s428 + $0x30] sm:$0xff]
            %v432 = vld [vmem:[%s428 + $0x38] sm:$0xff]
            %434 = vset.pattern.permute.xlu0 0
            %435 = vperm.xlu0 %434, %v416
            %v436 = vpop.permute.xlu0 %435
            %439 = vset.pattern.permute.xlu0 0
            %440 = vperm.xlu0 %439, %v417
            %v441 = vpop.permute.xlu0 %440
            %v443 = vsub.f32 %v429, %v436
            %v444 = vsub.f32 %v430, %v436
            %v445 = vsub.f32 %v431, %v441
            %v446 = vsub.f32 %v432, %v441
            %447 = vst [vmem:[%s428] sm:$0xff] %v443
            %448 = vst [vmem:[%s428 + $0x8] sm:$0xff] %v444
            %449 = vst [vmem:[%s428 + $0x30] sm:$0xff] %v445
            %450 = vst [vmem:[%s428 + $0x38] sm:$0xff] %v446
          $region68: #{generator_forward.1} parent=62 // loop_footer
            %s423 = sadd.s32 1, %s419
          $region69: #{generator_forward.1} parent=62 // loop_footer_branch
            %418 = sbr.rel target = $region65
          $region70: #{generator_forward.1} parent=62 // loop_exit
            _
        $region63: #{generator_forward.1} parent=50 // pred_fallthru
          _
        %s451 = smul.u32 2, %s18
        %p452 = scmp.lt.s32.totalorder %s451, 3
        %s453 = scalar_select %p452, %s451, 3
        %s454 = smul.addr %s453, 6
        %s455 = smul.addr %s454, 8
        %s456 = scalar_lea.vmem %s3, %s455
        // Predicated region
        $region71: #{generator_forward.1} parent=50 // pred_check
          %p457 = pneg %p122
        $region72: #{generator_forward.1} parent=50 // pred_check_branch
          %459 = sbr.rel (%p457) target = $region74
        $region73: #{generator_forward.1} parent=50 // pred_region
          %s460 = smul.u32 2, %s18
        $region74: #{generator_forward.1} parent=50 // pred_fallthru
          _
      $region51: #{generator_forward.1} parent=5 // pred_fallthru
        _
      %p461 = scmp.le.s32.totalorder 2, %s9
      // Predicated region
      $region75: #{generator_forward.1} parent=5 // pred_check
        %p462 = pneg %p461
      $region76: #{generator_forward.1} parent=5 // pred_check_branch
        %464 = sbr.rel (%p462) target = $region78
      $region77: #{generator_forward.1} parent=5 // pred_region
        %s465 = ssub.s32 %s9, 2
        // Predicated region
        $region79: #{generator_forward.1} parent=77 // pred_check
          %p466 = pneg %p128
        $region80: #{generator_forward.1} parent=77 // pred_check_branch
          %468 = sbr.rel (%p466) target = $region82
        $region81: #{generator_forward.1} parent=77 // pred_region
          %s469 = smul.u32 2, %s20
          %p470 = scmp.lt.s32.totalorder %s469, 3
          %s471 = scalar_select %p470, %s469, 3
          %s472 = smul.addr %s471, 6
          %s473 = smul.addr %s472, 8
          %s474 = scalar_lea.vmem %s3, %s473
        $region82: #{generator_forward.1} parent=77 // pred_fallthru
          _
      $region78: #{generator_forward.1} parent=5 // pred_fallthru
        _
    $region6: #{generator_forward.1} parent=1 // loop_footer
      %s13 = sadd.s32 1, %s9
    $region7: #{generator_forward.1} parent=1 // loop_footer_branch
      %8 = sbr.rel target = $region3
    $region8: #{generator_forward.1} parent=1 // loop_exit
      _

</llo_original>
